<compile_context>
chip_gen: v6e
topology: v6e:2x2x1
jax: 0.10.0
libtpu: 0.0.40
codegen_flags: <defaults>
</compile_context>

<pallas_src>
import jax
import jax.numpy as jnp
from jax.experimental import pallas as pl
from jax.experimental.pallas import tpu as pltpu


def _clip_loss_kernel(bounds_ref, labels_ref, img_ref, txt_ref, out_ref,
                      m_sc, l_sc, picked_sc):
    # bounds_ref : SMEM (num_b_tiles, 2) i32  per-B-tile label [min, max]
    # labels_ref : VMEM (tb, 1) i32
    # img_ref    : VMEM (tb, D)  (logit_scale already folded in, matmul dtype)
    # txt_ref    : VMEM (tn, D)  (matmul dtype)
    # out_ref    : VMEM (tb, 1) f32 per-example loss (written at last N tile)
    # scratch    : m_sc / l_sc / picked_sc VMEM (tb, 1) f32 online-softmax state
    i = pl.program_id(0)
    j = pl.program_id(1)
    num_j = pl.num_programs(1)

    @pl.when(j == 0)
    def _init():
        m_sc[...] = jnp.full_like(m_sc, -jnp.inf)
        l_sc[...] = jnp.zeros_like(l_sc)
        picked_sc[...] = jnp.zeros_like(picked_sc)

    # (tb, tn) logits tile: contract over D directly (MXU-friendly, no
    # explicit transpose / XLU copy), f32 accumulation.  The logit_scale has
    # already been applied (in f32, before any bf16 cast) by the wrapper, so
    # there is no (tb, tn) VPU scaling pass here.
    s = jax.lax.dot_general(
        img_ref[...], txt_ref[...],
        dimension_numbers=(((1,), (1,)), ((), ())),
        preferred_element_type=jnp.float32,
    )

    tn = s.shape[1]
    tile_lo = j * tn

    # Online softmax statistics across the N (tile) axis.
    m_prev = m_sc[...]                                             # (tb, 1)
    m_new = jnp.maximum(m_prev, jnp.max(s, axis=-1, keepdims=True))
    alpha = jnp.exp(m_prev - m_new)
    l_sc[...] = alpha * l_sc[...] + jnp.sum(jnp.exp(s - m_new),
                                            axis=-1, keepdims=True)
    m_sc[...] = m_new

    # Gather logits[i, labels[i]], but only when some label of this B tile
    # falls in [tile_lo, tile_lo + tn) -- skipped entirely on other tiles.
    has_label = jnp.logical_and(bounds_ref[i, 0] < tile_lo + tn,
                                bounds_ref[i, 1] >= tile_lo)

    @pl.when(has_label)
    def _pick():
        local_lab = labels_ref[...] - tile_lo                      # (tb, 1)
        col = jax.lax.broadcasted_iota(jnp.int32, s.shape, 1)      # tile-local
        picked_sc[...] = picked_sc[...] + jnp.sum(
            jnp.where(col == local_lab, s, 0.0), axis=-1, keepdims=True)

    @pl.when(j == num_j - 1)
    def _finalize():
        # per-example cross-entropy: logsumexp(logits_i) - logits_i[label_i]
        out_ref[...] = (m_sc[...] + jnp.log(l_sc[...])) - picked_sc[...]


def clip_loss(image_features, text_features, logit_scale, labels, *,
              block_b=1024, block_n=512, matmul_dtype=jnp.bfloat16):
    """Pallas implementation of ClipLoss.forward (world_size=1)."""
    B, D = image_features.shape
    N, D2 = text_features.shape
    assert D == D2

    tb = min(block_b, B)
    tn = min(block_n, N)
    # Keep >= 2 blocks along the parallel B axis when possible so v7x's two
    # TensorCores both get work (megacore sharding of the "parallel" axis).
    if B // tb < 2 and B % 2 == 0 and (B // 2) % 8 == 0:
        tb = B // 2
    assert B % tb == 0 and N % tn == 0, "B/N must be divisible by the tile sizes"
    grid = (B // tb, N // tn)

    # Fold logit_scale into the image features in f32 *before* the (optional)
    # bf16 cast -- precision-equivalent to scaling the f32 logits, but removes
    # a full (tb x tn) VPU multiply from every grid step.  The cast+scale is a
    # single fused XLA elementwise pass over B*D elements and also halves the
    # HBM bytes the kernel streams (bf16 vs f32).
    scale = jnp.asarray(logit_scale, jnp.float32)
    img = image_features.astype(jnp.float32) * scale
    txt = text_features.astype(jnp.float32)
    if matmul_dtype is not None:
        img = img.astype(matmul_dtype)
        txt = txt.astype(matmul_dtype)

    labels = jnp.asarray(labels, jnp.int32)
    labels2d = labels.reshape(B, 1)
    # Per-B-tile label [min, max] bounds, scalar-prefetched into SMEM so the
    # in-kernel label-pick pass is skipped on tiles with no ground-truth col.
    lab_tiles = labels.reshape(grid[0], tb)
    bounds = jnp.stack([jnp.min(lab_tiles, axis=1),
                        jnp.max(lab_tiles, axis=1)], axis=1).astype(jnp.int32)
    # TODO(synk): out-of-range labels silently contribute 0 to the picked
    # logit (loss becomes logsumexp) instead of erroring like F.cross_entropy.

    in_itemsize = jnp.dtype(img.dtype).itemsize
    cost = pl.CostEstimate(
        flops=2 * B * N * D,
        transcendentals=B * N,                        # exp per logit
        bytes_accessed=(B * D * in_itemsize           # image features once
                        + grid[0] * N * D * in_itemsize  # text per B tile
                        + B * 4 * 2),                    # labels + per-ex out
    )

    # VMEM budget: double-buffered img/txt tiles + f32 logits tile + scratch,
    # with headroom for elementwise temps -- sized for v7x's 64 MiB/TC too.
    vmem_need = (2 * (tb + tn) * D * in_itemsize
                 + 4 * tb * tn
                 + 16 * tb)
    vmem_limit = int(min(max(2 * vmem_need + (4 << 20), 16 << 20), 56 << 20))

    per_example = pl.pallas_call(
        _clip_loss_kernel,
        out_shape=jax.ShapeDtypeStruct((B, 1), jnp.float32),
        grid_spec=pltpu.PrefetchScalarGridSpec(
            num_scalar_prefetch=1,                    # bounds -> SMEM
            grid=grid,
            in_specs=[
                pl.BlockSpec((tb, 1), lambda i, j, bounds: (i, 0)),  # labels
                pl.BlockSpec((tb, D), lambda i, j, bounds: (i, 0)),  # image
                # NOTE(v6e): if DMA is still exposed with 128 MiB VMEM, this
                # spec can take pipeline_mode=pl.Buffered(3); not enabled by
                # default so the v7x 64 MiB budget stays comfortable.
                pl.BlockSpec((tn, D), lambda i, j, bounds: (j, 0)),  # text
            ],
            out_specs=pl.BlockSpec((tb, 1), lambda i, j, bounds: (i, 0)),
            scratch_shapes=[
                pltpu.VMEM((tb, 1), jnp.float32),   # running max m
                pltpu.VMEM((tb, 1), jnp.float32),   # running sum l
                pltpu.VMEM((tb, 1), jnp.float32),   # running picked logit
            ],
        ),
        compiler_params=pltpu.CompilerParams(
            dimension_semantics=("parallel", "arbitrary"),
            vmem_limit_bytes=vmem_limit,
        ),
        cost_estimate=cost,
    )(bounds, labels2d, img, txt)

    # Tiny final reduction in the wrapper-side XLA graph (keeps the B grid
    # axis parallel and the kernel output lane/store friendly).
    return jnp.mean(per_example)


def clip_loss_ref(image_features, text_features, logit_scale, labels):
    """Pure-JAX reference for verification."""
    logits = logit_scale * (image_features.astype(jnp.float32)
                            @ text_features.astype(jnp.float32).T)
    logp = jax.nn.log_softmax(logits, axis=-1)
    return -jnp.mean(logp[jnp.arange(logits.shape[0]), labels])


if __name__ == "__main__":
    key = jax.random.PRNGKey(0)
    k_img, k_txt = jax.random.split(key)

    # Small but representative shapes: D multiple of 128 (lane axis),
    # B = N = 16 with 8x8 tiles -> 2x2 grid exercises the online softmax,
    # the gated label gather, and the megacore-friendly B split.
    B, N, D = 16, 16, 128

    image_features = jax.random.normal(k_img, (B, D), dtype=jnp.float32)
    text_features = jax.random.normal(k_txt, (N, D), dtype=jnp.float32)
    image_features = image_features / jnp.linalg.norm(
        image_features, axis=-1, keepdims=True)
    text_features = text_features / jnp.linalg.norm(
        text_features, axis=-1, keepdims=True)

    logit_scale = jnp.exp(jnp.float32(2.6592))      # CLIP init: ln(1/0.07)
    labels = jnp.arange(B, dtype=jnp.int32)         # diagonal ground truth

    ref = clip_loss_ref(image_features, text_features, logit_scale, labels)

    # f32 matmul path (no operand cast): tight check vs. f32 reference.
    loss_f32 = clip_loss(image_features, text_features, logit_scale, labels,
                         block_b=8, block_n=8, matmul_dtype=None)
    loss_f32 = jax.block_until_ready(loss_f32)
    assert jnp.allclose(loss_f32, ref, rtol=2e-3, atol=2e-2), (loss_f32, ref)

    # Default (production) path: bf16 operands streamed over HBM, f32
    # accumulation on the MXU, f32 online softmax.
    loss_bf16 = clip_loss(image_features, text_features, logit_scale, labels,
                          block_b=8, block_n=8, matmul_dtype=jnp.bfloat16)
    loss_bf16 = jax.block_until_ready(loss_bf16)
    assert jnp.allclose(loss_bf16, ref, rtol=0.0, atol=5e-2), (loss_bf16, ref)

    # Default tile sizes (exercises the tb-cap path for megacore: tb -> B/2).
    loss_default = clip_loss(image_features, text_features, logit_scale, labels)
    loss_default = jax.block_until_ready(loss_default)
    assert jnp.allclose(loss_default, ref, rtol=0.0, atol=5e-2), (loss_default, ref)

    print("KERNEL_OK")
</pallas_src>

<mosaic_0001>
module attributes {stable_mosaic.version = 11 : i64} {
  func.func @_clip_loss_kernel(%arg0: i32, %arg1: i32, %arg2: memref<2x2xi32, #tpu.memory_space<smem>>, %arg3: memref<8x1xi32, #tpu.memory_space<vmem>>, %arg4: memref<8x128xf32, #tpu.memory_space<vmem>>, %arg5: memref<8x128xf32, #tpu.memory_space<vmem>>, %arg6: memref<8x1xf32, #tpu.memory_space<vmem>>, %arg7: memref<8x1xf32, #tpu.memory_space<vmem>>, %arg8: memref<8x1xf32, #tpu.memory_space<vmem>>, %arg9: memref<8x1xf32, #tpu.memory_space<vmem>>) attributes {dimension_semantics = [#tpu.dimension_semantics<parallel>, #tpu.dimension_semantics<arbitrary>], iteration_bounds = array<i64: 2, 2>, scalar_prefetch = 1 : i64, scratch_operands = 3 : i64, tpu.core_type = #tpu.core_type<tc>, window_params = [{transform_indices = @transform_0, window_bounds = array<i64: 8, 1>}, {transform_indices = @transform_1, window_bounds = array<i64: 8, 128>}, {transform_indices = @transform_2, window_bounds = array<i64: 8, 128>}, {transform_indices = @transform_3, window_bounds = array<i64: 8, 1>}]} {
    %c0_i32 = arith.constant 0 : i32
    %0 = arith.cmpi eq, %arg1, %c0_i32 : i32
    %1 = arith.extui %0 : i1 to i32
    %c0_i32_0 = arith.constant 0 : i32
    %2 = arith.cmpi ne, %1, %c0_i32_0 : i32
    scf.if %2 {
      %cst_18 = arith.constant 0xFF800000 : f32
      %36 = vector.broadcast %cst_18 : f32 to vector<8x1xf32>
      %c0_19 = arith.constant 0 : index
      %c0_20 = arith.constant 0 : index
      %37 = vector.load %arg7[%c0_19, %c0_20] : memref<8x1xf32, #tpu.memory_space<vmem>>, vector<8x1xf32>
      tpu.vector_store %arg7[%c0_19, %c0_20], %36 {strides = array<i32>} : memref<8x1xf32, #tpu.memory_space<vmem>>, vector<8x1xf32>,
      %cst_21 = arith.constant 0.000000e+00 : f32
      %38 = vector.broadcast %cst_21 : f32 to vector<8x1xf32>
      %c0_22 = arith.constant 0 : index
      %c0_23 = arith.constant 0 : index
      %39 = vector.load %arg8[%c0_22, %c0_23] : memref<8x1xf32, #tpu.memory_space<vmem>>, vector<8x1xf32>
      tpu.vector_store %arg8[%c0_22, %c0_23], %38 {strides = array<i32>} : memref<8x1xf32, #tpu.memory_space<vmem>>, vector<8x1xf32>,
      %cst_24 = arith.constant 0.000000e+00 : f32
      %40 = vector.broadcast %cst_24 : f32 to vector<8x1xf32>
      %c0_25 = arith.constant 0 : index
      %c0_26 = arith.constant 0 : index
      %41 = vector.load %arg9[%c0_25, %c0_26] : memref<8x1xf32, #tpu.memory_space<vmem>>, vector<8x1xf32>
      tpu.vector_store %arg9[%c0_25, %c0_26], %40 {strides = array<i32>} : memref<8x1xf32, #tpu.memory_space<vmem>>, vector<8x1xf32>,
    } else {
    }
    %c0 = arith.constant 0 : index
    %c0_1 = arith.constant 0 : index
    %3 = vector.load %arg4[%c0, %c0_1] : memref<8x128xf32, #tpu.memory_space<vmem>>, vector<8x128xf32>
    %c0_2 = arith.constant 0 : index
    %c0_3 = arith.constant 0 : index
    %4 = vector.load %arg5[%c0_2, %c0_3] : memref<8x128xf32, #tpu.memory_space<vmem>>, vector<8x128xf32>
    %cst = arith.constant dense<0.000000e+00> : vector<8x8xf32>
    %5 = tpu.matmul %3, %4, %cst {dimension_numbers = #tpu.dot_dimension_numbers<[1], [1], [0], [0], [0, 0, 1, 0], [], []>} : vector<8x128xf32>, vector<8x128xf32>, vector<8x8xf32> -> vector<8x8xf32>
    %c8_i32 = arith.constant 8 : i32
    %6 = arith.muli %arg1, %c8_i32 : i32
    %c0_4 = arith.constant 0 : index
    %c0_5 = arith.constant 0 : index
    %7 = vector.load %arg7[%c0_4, %c0_5] : memref<8x1xf32, #tpu.memory_space<vmem>>, vector<8x1xf32>
    %cst_6 = arith.constant dense<0xFF800000> : vector<8xf32>
    %8 = vector.multi_reduction <maximumf>, %5, %cst_6 [1] : vector<8x8xf32> to vector<8xf32>
    %9 = vector.shape_cast %8 : vector<8xf32> to vector<8x1xf32>
    %10 = arith.maximumf %7, %9 : vector<8x1xf32>
    %11 = arith.subf %7, %10 : vector<8x1xf32>
    %12 = math.exp %11 : vector<8x1xf32>
    %c0_7 = arith.constant 0 : index
    %c0_8 = arith.constant 0 : index
    %13 = vector.load %arg8[%c0_7, %c0_8] : memref<8x1xf32, #tpu.memory_space<vmem>>, vector<8x1xf32>
    %14 = arith.mulf %12, %13 : vector<8x1xf32>
    %15 = vector.broadcast %10 : vector<8x1xf32> to vector<8x8xf32>
    %16 = arith.subf %5, %15 : vector<8x8xf32>
    %17 = math.exp %16 : vector<8x8xf32>
    %cst_9 = arith.constant dense<0.000000e+00> : vector<8xf32>
    %18 = vector.multi_reduction <add>, %17, %cst_9 [1] : vector<8x8xf32> to vector<8xf32>
    %19 = vector.shape_cast %18 : vector<8xf32> to vector<8x1xf32>
    %20 = arith.addf %14, %19 : vector<8x1xf32>
    %c0_10 = arith.constant 0 : index
    %c0_11 = arith.constant 0 : index
    %21 = vector.load %arg8[%c0_10, %c0_11] : memref<8x1xf32, #tpu.memory_space<vmem>>, vector<8x1xf32>
    tpu.vector_store %arg8[%c0_10, %c0_11], %20 {strides = array<i32>} : memref<8x1xf32, #tpu.memory_space<vmem>>, vector<8x1xf32>,
    %c0_12 = arith.constant 0 : index
    %c0_13 = arith.constant 0 : index
    %22 = vector.load %arg7[%c0_12, %c0_13] : memref<8x1xf32, #tpu.memory_space<vmem>>, vector<8x1xf32>
    tpu.vector_store %arg7[%c0_12, %c0_13], %10 {strides = array<i32>} : memref<8x1xf32, #tpu.memory_space<vmem>>, vector<8x1xf32>,
    %23 = arith.index_cast %arg0 : i32 to index
    %c0_14 = arith.constant 0 : index
    %24 = memref.load %arg2[%23, %c0_14] : memref<2x2xi32, #tpu.memory_space<smem>>
    %c8_i32_15 = arith.constant 8 : i32
    %25 = arith.addi %6, %c8_i32_15 : i32
    %26 = arith.cmpi slt, %24, %25 : i32
    %27 = arith.index_cast %arg0 : i32 to index
    %c1 = arith.constant 1 : index
    %28 = memref.load %arg2[%27, %c1] : memref<2x2xi32, #tpu.memory_space<smem>>
    %29 = arith.cmpi sge, %28, %6 : i32
    %30 = arith.andi %26, %29 : i1
    %31 = arith.extui %30 : i1 to i32
    %c0_i32_16 = arith.constant 0 : i32
    %32 = arith.cmpi ne, %31, %c0_i32_16 : i32
    scf.if %32 {
      %c0_18 = arith.constant 0 : index
      %c0_19 = arith.constant 0 : index
      %36 = vector.load %arg3[%c0_18, %c0_19] : memref<8x1xi32, #tpu.memory_space<vmem>>, vector<8x1xi32>
      %37 = vector.broadcast %6 : i32 to vector<8x1xi32>
      %38 = arith.subi %36, %37 : vector<8x1xi32>
      %39 = tpu.iota {dimensions = array<i32: 1>} : vector<8x8xi32>
      %c0_20 = arith.constant 0 : index
      %c0_21 = arith.constant 0 : index
      %40 = vector.load %arg9[%c0_20, %c0_21] : memref<8x1xf32, #tpu.memory_space<vmem>>, vector<8x1xf32>
      %41 = vector.broadcast %38 : vector<8x1xi32> to vector<8x8xi32>
      %42 = arith.cmpi eq, %39, %41 : vector<8x8xi32>
      %cst_22 = arith.constant 0.000000e+00 : f32
      %43 = vector.broadcast %cst_22 : f32 to vector<8x8xf32>
      %44 = arith.select %42, %5, %43 : vector<8x8xi1>, vector<8x8xf32>
      %cst_23 = arith.constant dense<0.000000e+00> : vector<8xf32>
      %45 = vector.multi_reduction <add>, %44, %cst_23 [1] : vector<8x8xf32> to vector<8xf32>
      %46 = vector.shape_cast %45 : vector<8xf32> to vector<8x1xf32>
      %47 = arith.addf %40, %46 : vector<8x1xf32>
      %c0_24 = arith.constant 0 : index
      %c0_25 = arith.constant 0 : index
      %48 = vector.load %arg9[%c0_24, %c0_25] : memref<8x1xf32, #tpu.memory_space<vmem>>, vector<8x1xf32>
      tpu.vector_store %arg9[%c0_24, %c0_25], %47 {strides = array<i32>} : memref<8x1xf32, #tpu.memory_space<vmem>>, vector<8x1xf32>,
    } else {
    }
    %c1_i32 = arith.constant 1 : i32
    %33 = arith.cmpi eq, %arg1, %c1_i32 : i32
    %34 = arith.extui %33 : i1 to i32
    %c0_i32_17 = arith.constant 0 : i32
    %35 = arith.cmpi ne, %34, %c0_i32_17 : i32
    scf.if %35 {
      %c0_18 = arith.constant 0 : index
      %c0_19 = arith.constant 0 : index
      %36 = vector.load %arg7[%c0_18, %c0_19] : memref<8x1xf32, #tpu.memory_space<vmem>>, vector<8x1xf32>
      %c0_20 = arith.constant 0 : index
      %c0_21 = arith.constant 0 : index
      %37 = vector.load %arg8[%c0_20, %c0_21] : memref<8x1xf32, #tpu.memory_space<vmem>>, vector<8x1xf32>
      %38 = math.log %37 : vector<8x1xf32>
      %39 = arith.addf %36, %38 : vector<8x1xf32>
      %c0_22 = arith.constant 0 : index
      %c0_23 = arith.constant 0 : index
      %40 = vector.load %arg9[%c0_22, %c0_23] : memref<8x1xf32, #tpu.memory_space<vmem>>, vector<8x1xf32>
      %41 = arith.subf %39, %40 : vector<8x1xf32>
      %c0_24 = arith.constant 0 : index
      %c0_25 = arith.constant 0 : index
      %42 = vector.load %arg6[%c0_24, %c0_25] : memref<8x1xf32, #tpu.memory_space<vmem>>, vector<8x1xf32>
      tpu.vector_store %arg6[%c0_24, %c0_25], %41 {strides = array<i32>} : memref<8x1xf32, #tpu.memory_space<vmem>>, vector<8x1xf32>,
    } else {
    }
    return
  }
  func.func @transform_0(%arg0: i32, %arg1: i32, %arg2: memref<2x2xi32, #tpu.memory_space<smem>>) -> (i32, i32) {
    %c0_i32 = arith.constant 0 : i32
    %c0_i32_0 = arith.constant 0 : i32
    return %arg0, %c0_i32 : i32, i32
  }
  func.func @transform_1(%arg0: i32, %arg1: i32, %arg2: memref<2x2xi32, #tpu.memory_space<smem>>) -> (i32, i32) {
    %c0_i32 = arith.constant 0 : i32
    %c0_i32_0 = arith.constant 0 : i32
    return %arg0, %c0_i32 : i32, i32
  }
  func.func @transform_2(%arg0: i32, %arg1: i32, %arg2: memref<2x2xi32, #tpu.memory_space<smem>>) -> (i32, i32) {
    %c0_i32 = arith.constant 0 : i32
    %c0_i32_0 = arith.constant 0 : i32
    return %arg1, %c0_i32 : i32, i32
  }
  func.func @transform_3(%arg0: i32, %arg1: i32, %arg2: memref<2x2xi32, #tpu.memory_space<smem>>) -> (i32, i32) {
    %c0_i32 = arith.constant 0 : i32
    %c0_i32_0 = arith.constant 0 : i32
    return %arg0, %c0_i32 : i32, i32
  }
}

</mosaic_0001>

<llo_original>
// kernel: tpu_custom_call.1
$region0: #{tpu_custom_call.1}
  #allocation0 [shape = 'u32[]', space=smem, size = 0x4, offset = 0x4, fixed_abs, tag = 'smem constant byte address 0x4 - core index']
  #allocation1 [shape = 'u32[144,128]{1,0:T(1,128)}', space=vmem, size = 0x12000, scoped, tag = 'internal scratch']
  #allocation2 [shape = 'f32[8,1]{1,0:T(8,128)}', space=vmem, size = 0x1000, scoped, tag = 'scratch operand']
  #allocation3 [shape = 'f32[8,1]{1,0:T(8,128)}', space=vmem, size = 0x1000, scoped, tag = 'scratch operand']
  #allocation4 [shape = 'f32[8,1]{1,0:T(8,128)}', space=vmem, size = 0x1000, scoped, tag = 'scratch operand']
  #allocation5 [shape = 's32[1]{0}', space=sflag, size = 0x4, scoped, tag = 'scoped memory for tpu_custom_call.1']
  #allocation6 [shape = 'u8[1024]{0}', space=smem, size = 0x400, scoped, tag = 'prefetched SMEM operand 0']
  %s0 = inlined_call_operand.vmem [shape: s32[2,2], index: 0, kind: input, shape index: {}]
  %s1 = inlined_call_operand.vmem [shape: s32[16,1], index: 1, kind: input, shape index: {}]
  %s2 = inlined_call_operand.vmem [shape: f32[16,128], index: 2, kind: input, shape index: {}]
  %s3 = inlined_call_operand.hbm [shape: f32[16,128], index: 3, kind: input, shape index: {}]
  %s4 = inlined_call_operand.vmem [shape: f32[16,1], index: 4, kind: output, shape index: {}]
  %s5 = sld [smem:[#allocation0]]
  $region61: #{tpu_custom_call.1} parent=0
    _
  %s7 = ssub.s32 1, %s5
  %s8 = scalar_select 0, %s7, %s5
  %s9 = sshll.u32 %s0, 4
  %s10 = int_to_ptr.vmem [resolvable:$true] %s9
  %12 = dma.vmem_to_smem %s10, 32, [#allocation6], [#allocation5]
  %13 = dma.done [#allocation5], 32
  %14 = sfence
  $region1: #{tpu_custom_call.1} parent=0
    #allocation7 [shape = 'u8[8192]{0}', space=vmem, size = 0x2000, scoped, tag = 'input window, operand 3']
    #allocation8 [shape = 's32[2]{0}', space=sflag, size = 0x8, scoped, tag = 'scoped memory for tpu_custom_call.1']
    %15 = vsyncpa [#allocation8], 0
    %s16 = scalar_lea.sflag [#allocation8], 1
    %17 = vsyncpa %s16, 0
    loop: start=0, step=1, limit=6
    $region2: #{tpu_custom_call.1} parent=1 // loop_pre_header
      _
    $region3: #{tpu_custom_call.1} parent=1 // loop_header
      %s19 = sphi 0, %s23
      %p20 = scmp.ge.s32.totalorder %s19, 6
      %s26 = sphi 0, %s38
      %s27 = sphi 0, %s34
      %s28 = sphi 0, %s26
      %s29 = sphi 0, %s27
      %s30 = sphi 0, %s28
      %s31 = sphi 0, %s29
      %s41 = sphi 0, %s43
      %s44 = sphi 0, %s41
      %s45 = sphi 0, %s44
      %s61 = sphi 0, %s45
      %s67 = sphi 0, %s69
      %s70 = sphi 0, %s67
      %s71 = sphi 0, %s70
      %s87 = sphi 0, %s71
      %s93 = sphi 0, %s95
      %s96 = sphi 0, %s93
      %s97 = sphi 0, %s96
      %s113 = sphi 0, %s97
      %s119 = sphi 0, %s121
      %s122 = sphi 0, %s119
      %s123 = sphi 0, %s122
      %s139 = sphi 0, %s123
    $region4: #{tpu_custom_call.1} parent=1 // loop_header_branch
      %22 = sbr.rel (%p20) target = $region8
    $region5: #{tpu_custom_call.1} parent=1 // loop_body
      %s24 = ssub.s32 %s19, 1
      %s25 = ssub.s32 %s19, 2
      %s32 = sadd.s32 1, %s27
      %p33 = scmp.ge.s32.totalorder %s32, 2
      %s34 = scalar_select %p33, 0, %s32
      %s35 = sadd.s32 1, %s26
      %s36 = scalar_select %p33, %s35, %s26
      %p37 = scmp.ge.s32.totalorder %s36, 2
      %s38 = scalar_select %p37, 0, %s36
      %s39 = ssub.s32 %s26, %s38
      %p40 = scmp.eq.s32.totalorder %s39, 0
      %s42 = sadd.s32 %s41, 1
      %s43 = scalar_select %p40, %s41, %s42
      %p46 = pneg %p40
      %p47 = scmp.eq.s32.totalorder %s19, 3
      %p48 = por %p46, %p47
      %p49 = scmp.ne.s32.totalorder %s41, %s44
      %p50 = scmp.eq.s32.totalorder %s19, 0
      %p51 = por %p49, %p50
      %p52 = scmp.ne.s32.totalorder %s41, %s44
      %p53 = scmp.eq.s32.totalorder %s24, 3
      %p54 = por %p52, %p53
      %p55 = scmp.ne.s32.totalorder %s44, %s45
      %p56 = scmp.eq.s32.totalorder %s24, 0
      %p57 = por %p55, %p56
      %p58 = scmp.ne.s32.totalorder %s44, %s45
      %p59 = scmp.eq.s32.totalorder %s25, 3
      %p60 = por %p58, %p59
      %p62 = scmp.ne.s32.totalorder %s45, %s61
      %p63 = scmp.eq.s32.totalorder %s25, 0
      %p64 = por %p62, %p63
      %s65 = ssub.s32 %s26, %s38
      %p66 = scmp.eq.s32.totalorder %s65, 0
      %s68 = sadd.s32 %s67, 1
      %s69 = scalar_select %p66, %s67, %s68
      %p72 = pneg %p66
      %p73 = scmp.eq.s32.totalorder %s19, 3
      %p74 = por %p72, %p73
      %p75 = scmp.ne.s32.totalorder %s67, %s70
      %p76 = scmp.eq.s32.totalorder %s19, 0
      %p77 = por %p75, %p76
      %p78 = scmp.ne.s32.totalorder %s67, %s70
      %p79 = scmp.eq.s32.totalorder %s24, 3
      %p80 = por %p78, %p79
      %p81 = scmp.ne.s32.totalorder %s70, %s71
      %p82 = scmp.eq.s32.totalorder %s24, 0
      %p83 = por %p81, %p82
      %p84 = scmp.ne.s32.totalorder %s70, %s71
      %p85 = scmp.eq.s32.totalorder %s25, 3
      %p86 = por %p84, %p85
      %p88 = scmp.ne.s32.totalorder %s71, %s87
      %p89 = scmp.eq.s32.totalorder %s25, 0
      %p90 = por %p88, %p89
      %s91 = ssub.s32 %s27, %s34
      %p92 = scmp.eq.s32.totalorder %s91, 0
      %s94 = sadd.s32 %s93, 1
      %s95 = scalar_select %p92, %s93, %s94
      %p98 = pneg %p92
      %p99 = scmp.eq.s32.totalorder %s19, 3
      %p100 = por %p98, %p99
      %p101 = scmp.ne.s32.totalorder %s93, %s96
      %p102 = scmp.eq.s32.totalorder %s19, 0
      %p103 = por %p101, %p102
      %p104 = scmp.ne.s32.totalorder %s93, %s96
      %p105 = scmp.eq.s32.totalorder %s24, 3
      %p106 = por %p104, %p105
      %p107 = scmp.ne.s32.totalorder %s96, %s97
      %p108 = scmp.eq.s32.totalorder %s24, 0
      %p109 = por %p107, %p108
      %p110 = scmp.ne.s32.totalorder %s96, %s97
      %p111 = scmp.eq.s32.totalorder %s25, 3
      %p112 = por %p110, %p111
      %p114 = scmp.ne.s32.totalorder %s97, %s113
      %p115 = scmp.eq.s32.totalorder %s25, 0
      %p116 = por %p114, %p115
      %s117 = ssub.s32 %s26, %s38
      %p118 = scmp.eq.s32.totalorder %s117, 0
      %s120 = sadd.s32 %s119, 1
      %s121 = scalar_select %p118, %s119, %s120
      %p124 = pneg %p118
      %p125 = scmp.eq.s32.totalorder %s19, 3
      %p126 = por %p124, %p125
      %p127 = scmp.ne.s32.totalorder %s119, %s122
      %p128 = scmp.eq.s32.totalorder %s19, 0
      %p129 = por %p127, %p128
      %p130 = scmp.ne.s32.totalorder %s119, %s122
      %p131 = scmp.eq.s32.totalorder %s24, 3
      %p132 = por %p130, %p131
      %p133 = scmp.ne.s32.totalorder %s122, %s123
      %p134 = scmp.eq.s32.totalorder %s24, 0
      %p135 = por %p133, %p134
      %p136 = scmp.ne.s32.totalorder %s122, %s123
      %p137 = scmp.eq.s32.totalorder %s25, 3
      %p138 = por %p136, %p137
      %p140 = scmp.ne.s32.totalorder %s123, %s139
      %p141 = scmp.eq.s32.totalorder %s25, 0
      %p142 = por %p140, %p141
      %p143 = scmp.le.s32.totalorder 1, %s19
      %p144 = scmp.lt.s32.totalorder %s19, 5
      %p145 = pnand %p143, %p144
      %p146 = pneg %p145
      // Predicated region
      $region9: #{tpu_custom_call.1} parent=5 // pred_check
        _
      $region10: #{tpu_custom_call.1} parent=5 // pred_check_branch
        %148 = sbr.rel (%p145) target = $region12
      $region11: #{tpu_custom_call.1} parent=5 // pred_region
        %s149 = ssub.s32 %s19, 1
      $region12: #{tpu_custom_call.1} parent=5 // pred_fallthru
        _
      %p150 = scmp.lt.s32.totalorder %s19, 4
      // Predicated region
      $region13: #{tpu_custom_call.1} parent=5 // pred_check
        %p151 = pneg %p150
      $region14: #{tpu_custom_call.1} parent=5 // pred_check_branch
        %153 = sbr.rel (%p151) target = $region16
      $region15: #{tpu_custom_call.1} parent=5 // pred_region
        // Predicated region
        $region17: #{tpu_custom_call.1} parent=15 // pred_check
          %p154 = pneg %p51
        $region18: #{tpu_custom_call.1} parent=15 // pred_check_branch
          %156 = sbr.rel (%p154) target = $region20
        $region19: #{tpu_custom_call.1} parent=15 // pred_region
          %p157 = scmp.lt.s32.totalorder %s26, 1
          %s158 = scalar_select %p157, %s26, 1
          %s159 = smul.addr %s158, 8
          %s160 = scalar_lea.vmem %s1, %s159
        $region20: #{tpu_custom_call.1} parent=15 // pred_fallthru
          _
        // Predicated region
        $region21: #{tpu_custom_call.1} parent=15 // pred_check
          %p161 = pneg %p77
        $region22: #{tpu_custom_call.1} parent=15 // pred_check_branch
          %163 = sbr.rel (%p161) target = $region24
        $region23: #{tpu_custom_call.1} parent=15 // pred_region
          %p164 = scmp.lt.s32.totalorder %s26, 1
          %s165 = scalar_select %p164, %s26, 1
          %s166 = smul.addr %s165, 8
          %s167 = scalar_lea.vmem %s2, %s166
        $region24: #{tpu_custom_call.1} parent=15 // pred_fallthru
          _
        // Predicated region
        $region25: #{tpu_custom_call.1} parent=15 // pred_check
          %p168 = pneg %p103
        $region26: #{tpu_custom_call.1} parent=15 // pred_check_branch
          %170 = sbr.rel (%p168) target = $region28
        $region27: #{tpu_custom_call.1} parent=15 // pred_region
          %s171 = sand.u32 %s93, 1
          %s172 = scalar_lea.sflag [#allocation8], %s171
          %s173 = sand.u32 %s93, 1
          %s174 = smul.addr %s173, 8
          %s175 = scalar_lea.vmem [#allocation7], %s174
          %s177 = ssub.s32 128, 128
          %178 = vsyncadd %s172, %s177
          %s179 = smul.addr %s27, 128
          %s180 = scalar_lea.hbm %s3, %s179
          %s182 = sshll.u32 %s175, 4
          %s183 = int_to_ptr.vmem [resolvable:$true] %s182
          %185 = dma.hbm_to_vmem [thread:$0]  %s180, 128, %s183, %s172
        $region28: #{tpu_custom_call.1} parent=15 // pred_fallthru
          _
      $region16: #{tpu_custom_call.1} parent=5 // pred_fallthru
        _
      %p186 = scmp.le.s32.totalorder 1, %s19
      %p187 = scmp.lt.s32.totalorder %s19, 5
      %p188 = pnand %p186, %p187
      %p189 = pneg %p188
      // Predicated region
      $region29: #{tpu_custom_call.1} parent=5 // pred_check
        _
      $region30: #{tpu_custom_call.1} parent=5 // pred_check_branch
        %191 = sbr.rel (%p188) target = $region32
      $region31: #{tpu_custom_call.1} parent=5 // pred_region
        %s192 = ssub.s32 %s19, 1
        %s193 = sand.u32 %s96, 1
        %s194 = scalar_lea.sflag [#allocation8], %s193
        %s195 = sand.u32 %s96, 1
        %s196 = smul.addr %s195, 8
        %s197 = scalar_lea.vmem [#allocation7], %s196
        // Predicated region
        $region33: #{tpu_custom_call.1} parent=31 // pred_check
          %p198 = pneg %p109
        $region34: #{tpu_custom_call.1} parent=31 // pred_check_branch
          %200 = sbr.rel (%p198) target = $region36
        $region35: #{tpu_custom_call.1} parent=31 // pred_region
          %201 = dma.done %s194, 128
        $region36: #{tpu_custom_call.1} parent=31 // pred_fallthru
          _
        %p202 = scmp.lt.s32.totalorder %s28, 1
        %s203 = scalar_select %p202, %s28, 1
        %s204 = smul.addr %s203, 8
        %s205 = scalar_lea.vmem %s1, %s204
        %p206 = pneg %p57
        %p207 = pneg %p54
        %p208 = scmp.lt.s32.totalorder %s28, 1
        %s209 = scalar_select %p208, %s28, 1
        %s210 = smul.addr %s209, 8
        %s211 = scalar_lea.vmem %s2, %s210
        %p212 = pneg %p83
        %p213 = pneg %p80
        %s214 = sand.u32 %s96, 1
        %s215 = scalar_lea.sflag [#allocation8], %s214
        %s216 = sand.u32 %s96, 1
        %s217 = smul.addr %s216, 8
        %s218 = scalar_lea.vmem [#allocation7], %s217
        %p219 = pneg %p109
        %p220 = pneg %p106
        %p221 = pneg %p135
        %p222 = pneg %p132
        %p223 = scmp.lt.s32.totalorder %s28, 1
        %s224 = scalar_select %p223, %s28, 1
        %s225 = smul.addr %s224, 8
        %s226 = scalar_lea.vmem %s4, %s225
        %p227 = scmp.lt.s32.totalorder %s28, 1
        %s228 = scalar_select %p227, %s28, 1
        %s229 = smul.addr %s228, 8
        %s230 = scalar_lea.vmem %s1, %s229
        %p231 = scmp.lt.s32.totalorder %s28, 1
        %s232 = scalar_select %p231, %s28, 1
        %s233 = smul.addr %s232, 8
        %s234 = scalar_lea.vmem %s2, %s233
        %p235 = scmp.lt.s32.totalorder %s28, 1
        %s236 = scalar_select %p235, %s28, 1
        %s237 = smul.addr %s236, 8
        %s238 = scalar_lea.vmem %s4, %s237
        %p239 = scmp.eq.s32.totalorder %s29, 0
        // Predicated region
        $region37: #{tpu_custom_call.1} parent=31 // pred_check
          %p240 = pneg %p239
        $region38: #{tpu_custom_call.1} parent=31 // pred_check_branch
          %242 = sbr.rel (%p240) target = $region40
        $region39: #{tpu_custom_call.1} parent=31 // pred_region
          %vm243 = vcmask 7168
          %244 = vst.msk [vmem:[#allocation2] sm:$0xff] %vm243, -inf
          %245 = vst.msk [vmem:[#allocation3] sm:$0xff] %vm243, 0.0
          %246 = vst.msk [vmem:[#allocation4] sm:$0xff] %vm243, 0.0
        $region40: #{tpu_custom_call.1} parent=31 // pred_fallthru
          _
        %v247 = vld [vmem:[%s234] sm:$0xff]
        %v248 = vld [vmem:[%s197] sm:$0xff]
        %249 = vmatprep.subr.mxu0 0.0
        %250 = vmatpush1.xpose.msra.mxu0 0.0
        %251 = vmatprep.subr.mxu0 0.0
        %252 = vmatpush1.xpose.msra.mxu0 0.0
        %253 = vmatprep.subr.mxu0 0.0
        %254 = vmatpush1.xpose.msra.mxu0 0.0
        %255 = vmatprep.subr.mxu0 0.0
        %256 = vmatpush1.xpose.msra.mxu0 0.0
        %257 = vmatprep.subr.mxu0 0.0
        %258 = vmatpush1.xpose.msra.mxu0 0.0
        %259 = vmatprep.subr.mxu0 0.0
        %260 = vmatpush1.xpose.msra.mxu0 0.0
        %261 = vmatprep.subr.mxu0 0.0
        %262 = vmatpush1.xpose.msra.mxu0 0.0
        %263 = vmatprep.subr.mxu0 0.0
        %264 = vmatpush1.xpose.msra.mxu0 0.0
        %265 = vmatprep.subr.mxu0 0.0
        %266 = vmatpush1.xpose.msra.mxu0 0.0
        %267 = vmatprep.subr.mxu0 0.0
        %268 = vmatpush1.xpose.msra.mxu0 0.0
        %269 = vmatprep.subr.mxu0 0.0
        %270 = vmatpush1.xpose.msra.mxu0 0.0
        %271 = vmatprep.subr.mxu0 0.0
        %272 = vmatpush1.xpose.msra.mxu0 0.0
        %273 = vmatprep.subr.mxu0 0.0
        %274 = vmatpush1.xpose.msra.mxu0 0.0
        %275 = vmatprep.subr.mxu0 0.0
        %276 = vmatpush1.xpose.msra.mxu0 0.0
        %277 = vmatprep.subr.mxu0 0.0
        %278 = vmatpush1.xpose.msra.mxu0 0.0
        %279 = vmatprep.subr.mxu0 0.0
        %280 = vmatpush1.xpose.msra.mxu0 %v248
        %281 = vmatprep.subr.mxu0 0.0
        %282 = vmatpush2.xpose.msra.mxu0 0.0
        %283 = vmatprep.subr.mxu0 0.0
        %284 = vmatpush2.xpose.msra.mxu0 0.0
        %285 = vmatprep.subr.mxu0 0.0
        %286 = vmatpush2.xpose.msra.mxu0 0.0
        %287 = vmatprep.subr.mxu0 0.0
        %288 = vmatpush2.xpose.msra.mxu0 0.0
        %289 = vmatprep.subr.mxu0 0.0
        %290 = vmatpush2.xpose.msra.mxu0 0.0
        %291 = vmatprep.subr.mxu0 0.0
        %292 = vmatpush2.xpose.msra.mxu0 0.0
        %293 = vmatprep.subr.mxu0 0.0
        %294 = vmatpush2.xpose.msra.mxu0 0.0
        %295 = vmatprep.subr.mxu0 0.0
        %296 = vmatpush2.xpose.msra.mxu0 0.0
        %297 = vmatprep.subr.mxu0 0.0
        %298 = vmatpush2.xpose.msra.mxu0 0.0
        %299 = vmatprep.subr.mxu0 0.0
        %300 = vmatpush2.xpose.msra.mxu0 0.0
        %301 = vmatprep.subr.mxu0 0.0
        %302 = vmatpush2.xpose.msra.mxu0 0.0
        %303 = vmatprep.subr.mxu0 0.0
        %304 = vmatpush2.xpose.msra.mxu0 0.0
        %305 = vmatprep.subr.mxu0 0.0
        %306 = vmatpush2.xpose.msra.mxu0 0.0
        %307 = vmatprep.subr.mxu0 0.0
        %308 = vmatpush2.xpose.msra.mxu0 0.0
        %309 = vmatprep.subr.mxu0 0.0
        %310 = vmatpush2.xpose.msra.mxu0 0.0
        %311 = vmatprep.subr.mxu0 0.0
        %312 = vmatpush2.xpose.msra.mxu0 0.0
        %313 = vmatprep.mubr.f32.mxu0 0.0
        %314 = vmatmul.mubr.f32.gmra.mxu0 %v247
        %v315 = vpop.f32.mrf.mxu0
        %v316 = vadd.f32 0.0, %v315
        %v317 = vpop.f32.mrf.mxu0
        %318 = vdwg.mxu0
        %s319 = smul.u32 %s29, 8
        %v320 = vld [vmem:[#allocation2] sm:$0xff]
        %vm321 = vcmask 64512
        %v322 = vsel %vm321, %v316, -inf
        %323 = vmax.xlane.f32.xlu0 %v322
        %v324 = vpop.xlane.xlu0 %323
        %v325 = vmax.f32 %v320, %v324
        %v326 = vsub.f32 %v320, %v325
        %v327 = vmul.f32 %v326, 1.442695
        %v328 = vpow.pop %v327
        %v329 = vld [vmem:[#allocation3] sm:$0xff]
        %v330 = vmul.f32 %v328, %v329
        %332 = vset.pattern.permute.xlu0 0
        %333 = vperm.xlu0 %332, %v325
        %v334 = vpop.permute.xlu0 %333
        %v336 = vsub.f32 %v316, %v334
        %v337 = vmul.f32 %v336, 1.442695
        %v338 = vpow.pop %v337
        %v339 = vsel %vm321, %v338, 0.0
        %340 = vadd.xlane.f32.xlu0 %v339
        %v341 = vpop.xlane.xlu0 %340
        %v342 = vadd.f32 %v330, %v341
        %vm343 = vcmask 7168
        %344 = vst.msk [vmem:[#allocation3] sm:$0xff] %vm343, %v342
        %345 = vst.msk [vmem:[#allocation2] sm:$0xff] %vm343, %v325
        %s346 = smul.u32 %s28, 128
        %s347 = sld [smem:[#allocation6 + %s346]]
        %s348 = sadd.s32 %s319, 8
        %p349 = scmp.lt.s32.totalorder %s347, %s348
        %s350 = sadd.s32 %s346, 1
        %s351 = sld [smem:[#allocation6 + %s350]]
        %p352 = scmp.ge.s32.totalorder %s351, %s319
        %p353 = pnand %p349, %p352
        %p354 = pneg %p353
        // Predicated region
        $region41: #{tpu_custom_call.1} parent=31 // pred_check
          _
        $region42: #{tpu_custom_call.1} parent=31 // pred_check_branch
          %356 = sbr.rel (%p353) target = $region44
        $region43: #{tpu_custom_call.1} parent=31 // pred_region
          %v357 = vld [vmem:[%s230] sm:$0xff]
          %v358 = vstv %s319
          %v359 = vsub.s32 %v357, %v358
          %v360 = vlaneseq
          %v361 = vand.u32 %v360, 127
          %v362 = vld [vmem:[#allocation4] sm:$0xff]
          %363 = vset.pattern.permute.xlu0 0
          %364 = vperm.xlu0 %363, %v359
          %v365 = vpop.permute.xlu0 %364
          %vm366 = vcmp.eq.s32.totalorder %v361, %v365
          %v367 = vsel %vm366, %v316, 0.0
          %v368 = vsel %vm321, %v367, 0.0
          %369 = vadd.xlane.f32.xlu0 %v368
          %v370 = vpop.xlane.xlu0 %369
          %v371 = vadd.f32 %v362, %v370
          %372 = vst.msk [vmem:[#allocation4] sm:$0xff] %vm343, %v371
        $region44: #{tpu_custom_call.1} parent=31 // pred_fallthru
          _
        %p373 = scmp.eq.s32.totalorder %s29, 1
        // Predicated region
        $region45: #{tpu_custom_call.1} parent=31 // pred_check
          %p374 = pneg %p373
        $region46: #{tpu_custom_call.1} parent=31 // pred_check_branch
          %376 = sbr.rel (%p374) target = $region48
        $region47: #{tpu_custom_call.1} parent=31 // pred_region
          %v377 = vld [vmem:[#allocation2] sm:$0xff]
          %v378 = vld [vmem:[#allocation3] sm:$0xff]
          %v379 = vlog2.pop %v378
          %v380 = vmul.f32 %v379, 0.6931472
          %v381 = vadd.f32 %v377, %v380
          %v382 = vld [vmem:[#allocation4] sm:$0xff]
          %v383 = vsub.f32 %v381, %v382
          %384 = vst.msk [vmem:[%s238] sm:$0xff] %vm343, %v383
        $region48: #{tpu_custom_call.1} parent=31 // pred_fallthru
          _
        %p385 = scmp.lt.s32.totalorder %s28, 1
        %s386 = scalar_select %p385, %s28, 1
        %s387 = smul.addr %s386, 8
        %s388 = scalar_lea.vmem %s4, %s387
        // Predicated region
        $region49: #{tpu_custom_call.1} parent=31 // pred_check
          %p389 = pneg %p132
        $region50: #{tpu_custom_call.1} parent=31 // pred_check_branch
          %391 = sbr.rel (%p389) target = $region52
        $region51: #{tpu_custom_call.1} parent=31 // pred_region
          _
        $region52: #{tpu_custom_call.1} parent=31 // pred_fallthru
          _
      $region32: #{tpu_custom_call.1} parent=5 // pred_fallthru
        _
      %p392 = scmp.le.s32.totalorder 2, %s19
      // Predicated region
      $region53: #{tpu_custom_call.1} parent=5 // pred_check
        %p393 = pneg %p392
      $region54: #{tpu_custom_call.1} parent=5 // pred_check_branch
        %395 = sbr.rel (%p393) target = $region56
      $region55: #{tpu_custom_call.1} parent=5 // pred_region
        %s396 = ssub.s32 %s19, 2
        // Predicated region
        $region57: #{tpu_custom_call.1} parent=55 // pred_check
          %p397 = pneg %p138
        $region58: #{tpu_custom_call.1} parent=55 // pred_check_branch
          %399 = sbr.rel (%p397) target = $region60
        $region59: #{tpu_custom_call.1} parent=55 // pred_region
          %p400 = scmp.lt.s32.totalorder %s30, 1
          %s401 = scalar_select %p400, %s30, 1
          %s402 = smul.addr %s401, 8
          %s403 = scalar_lea.vmem %s4, %s402
        $region60: #{tpu_custom_call.1} parent=55 // pred_fallthru
          _
      $region56: #{tpu_custom_call.1} parent=5 // pred_fallthru
        _
    $region6: #{tpu_custom_call.1} parent=1 // loop_footer
      %s23 = sadd.s32 1, %s19
    $region7: #{tpu_custom_call.1} parent=1 // loop_footer_branch
      %18 = sbr.rel target = $region3
    $region8: #{tpu_custom_call.1} parent=1 // loop_exit
      _
    %404 = vsyncpa [#allocation8], 1
    %s405 = scalar_lea.sflag [#allocation8], 1
    %406 = vsyncpa %s405, 1

</llo_original>
